<compile_context>
chip_gen: v6e
topology: v6e:2x2x1
jax: 0.10.0
libtpu: 0.0.40
codegen_flags: <defaults>
</compile_context>

<pallas_src>
import functools

import jax
import jax.numpy as jnp
from jax.experimental import pallas as pl
from jax.experimental.pallas import tpu as pltpu


# Tile upper bounds (clamped to the aligned problem dims).
_TM_MAX = 512
_TN_MAX = 512
_TK_MAX = 1024


def _round_up(v: int, m: int) -> int:
    return ((v + m - 1) // m) * m


def _kn_plan(input_dim: int, output_dim: int):
    """Padded K/N extents and the tk/tn tiles they were padded for.

    Depends only on (input_dim, output_dim), so weight/bias padding can be done
    once at construction time.
    """
    k_al = _round_up(input_dim, 128)
    n_al = _round_up(output_dim, 128)
    tk = min(_TK_MAX, k_al)
    tn = min(_TN_MAX, n_al)
    kp = _round_up(k_al, tk)
    np_ = _round_up(n_al, tn)
    return kp, np_, tk, tn


def _encoder_kernel(x_ref, w_ref, b_ref, o_ref):
    """One (tm, tn) output tile; K is the last (reduction) grid axis.

    The output block index (i, j) is constant across k, so the f32 output block
    stays resident in VMEM and is used directly as the accumulator: bias init
    at k == 0, one MXU partial product added per K step, single HBM writeback.
    """
    k = pl.program_id(2)

    @pl.when(k == 0)
    def _():
        o_ref[...] = jnp.broadcast_to(b_ref[...], o_ref.shape).astype(o_ref.dtype)

    # In-kernel bf16 cast of the activations (no wrapper-side HBM round trip);
    # weights arrive pre-cast to bf16. f32 accumulation on the MXU.
    o_ref[...] += jnp.dot(
        x_ref[...].astype(jnp.bfloat16),
        w_ref[...],
        preferred_element_type=jnp.float32,
    )


@functools.partial(jax.jit, static_argnames=("output_dim",))
def modality_encoder_forward(
    x: jax.Array,
    weight_p: jax.Array,   # pre-padded, bf16, shape (Kp, Np)
    bias_p: jax.Array,     # pre-padded, f32,  shape (1, Np)
    *,
    output_dim: int,
) -> jax.Array:
    """Pallas forward: x [B, input_dim] -> [B, output_dim] (f32)."""
    batch, input_dim = x.shape
    kp, np_ = weight_p.shape
    assert bias_p.shape == (1, np_)

    # Re-derive tk/tn consistently with how the params were padded.
    tk = min(_TK_MAX, kp)
    tn = min(_TN_MAX, np_)

    # M tiling (batch is call-dependent).
    m_al = _round_up(batch, 8)
    tm = min(_TM_MAX, m_al)
    mp = _round_up(m_al, tm)

    # v7x has 2 TensorCores: keep at least 2 parallel (i, j) tiles when the
    # problem allows it, so megacore sharding has work to distribute.
    if (mp // tm) * (np_ // tn) < 2:
        if tn % 256 == 0:
            tn //= 2
        elif tm % 16 == 0:
            tm //= 2

    # Pad the activations only (params were padded once at init). K zero-pad
    # contributes exactly zero to the dot; padded M rows are sliced off below.
    pad_m, pad_k = mp - batch, kp - input_dim
    x_p = jnp.pad(x, ((0, pad_m), (0, pad_k))) if (pad_m or pad_k) else x

    grid = (mp // tm, np_ // tn, kp // tk)

    # VMEM budget: double-buffered x / W / bias blocks plus the resident f32
    # output block (also double-buffered by the pipeline). Generous headroom,
    # still far under v7x's 64 MiB for the largest tile configuration.
    x_item = x_p.dtype.itemsize
    vmem_need = 2 * (tm * tk * x_item + tk * tn * 2 + tm * tn * 4 + tn * 4)
    vmem_limit = int(min(100 * 1024 * 1024, max(32 * 1024 * 1024, 2 * vmem_need)))

    cost = pl.CostEstimate(
        flops=2 * mp * kp * np_,
        transcendentals=0,
        bytes_accessed=int(
            x_p.size * x_item * (np_ // tn)          # x re-read once per N tile
            + weight_p.size * 2 * (mp // tm)          # W re-read once per M tile
            + bias_p.size * 4 * (mp // tm)
            + mp * np_ * 4                            # single f32 writeback
        ),
    )

    out_p = pl.pallas_call(
        _encoder_kernel,
        out_shape=jax.ShapeDtypeStruct((mp, np_), jnp.float32),
        grid=grid,
        in_specs=[
            pl.BlockSpec((tm, tk), lambda i, j, k: (i, k)),   # x tile
            pl.BlockSpec((tk, tn), lambda i, j, k: (k, j)),   # W tile
            pl.BlockSpec((1, tn), lambda i, j, k: (0, j)),    # bias slab per N tile
        ],
        out_specs=pl.BlockSpec((tm, tn), lambda i, j, k: (i, j)),
        compiler_params=pltpu.CompilerParams(
            dimension_semantics=("parallel", "parallel", "arbitrary"),
            vmem_limit_bytes=vmem_limit,
        ),
        cost_estimate=cost,
    )(x_p, weight_p, bias_p)

    return out_p[:batch, :output_dim]


class ModalityEncoderPallas:
    """JAX/Pallas counterpart of the PyTorch ModalityEncoder base class."""

    def __init__(self, input_dim: int, output_dim: int, key: jax.Array):
        self.input_dim = input_dim
        self.output_dim = output_dim
        kw, kb = jax.random.split(key)
        scale = 1.0 / jnp.sqrt(jnp.float32(input_dim))
        w = jax.random.normal(kw, (input_dim, output_dim), jnp.float32) * scale
        b = jax.random.normal(kb, (1, output_dim), jnp.float32) * 0.01
        # Unpadded copies kept only for the reference check.
        self.weight = w
        self.bias = b
        # Pre-cast (bf16 MXU operands) and pre-pad the static params ONCE.
        kp, np_, _, _ = _kn_plan(input_dim, output_dim)
        pk, pn = kp - input_dim, np_ - output_dim
        w_bf = w.astype(jnp.bfloat16)
        self.weight_p = jnp.pad(w_bf, ((0, pk), (0, pn))) if (pk or pn) else w_bf
        self.bias_p = jnp.pad(b, ((0, 0), (0, pn))) if pn else b

    def __call__(self, x: jax.Array) -> jax.Array:
        return modality_encoder_forward(
            x, self.weight_p, self.bias_p, output_dim=self.output_dim
        )


def _reference(x, weight, bias):
    # Same math as the kernel: bf16 operands, f32 accumulation, f32 bias.
    return (
        jnp.dot(
            x.astype(jnp.bfloat16),
            weight.astype(jnp.bfloat16),
            preferred_element_type=jnp.float32,
        )
        + bias.astype(jnp.float32)
    )


if __name__ == "__main__":
    key = jax.random.PRNGKey(0)
    k_x, k_x2, k_p, k_p2 = jax.random.split(key, 4)

    # Small case consistent with the module (batch=8, input_dim=32, output_dim=64):
    # collapses to a single grid step.
    batch, input_dim, output_dim = 8, 32, 64
    x = jax.random.normal(k_x, (batch, input_dim), jnp.float32)
    enc = ModalityEncoderPallas(input_dim, output_dim, k_p)
    out = jax.block_until_ready(enc(x))
    ref = _reference(x, enc.weight, enc.bias)
    assert out.shape == (batch, output_dim)
    assert jnp.allclose(out, ref, atol=1e-2, rtol=1e-2), float(
        jnp.max(jnp.abs(out - ref))
    )

    # Slightly larger, unaligned case: exercises padding, slicing and the
    # dual-TensorCore parallel-grid split (grid becomes (1, 2, 1)).
    batch2, in2, out2 = 96, 160, 144
    x2 = jax.random.normal(k_x2, (batch2, in2), jnp.float32)
    enc2 = ModalityEncoderPallas(in2, out2, k_p2)
    y2 = jax.block_until_ready(enc2(x2))
    ref2 = _reference(x2, enc2.weight, enc2.bias)
    assert y2.shape == (batch2, out2)
    assert jnp.allclose(y2, ref2, atol=1e-2, rtol=1e-2), float(
        jnp.max(jnp.abs(y2 - ref2))
    )

    print("KERNEL_OK")
</pallas_src>

<mosaic_0001>
module attributes {stable_mosaic.version = 11 : i64} {
  func.func @_encoder_kernel(%arg0: i32, %arg1: i32, %arg2: i32, %arg3: memref<8x128xf32, #tpu.memory_space<vmem>>, %arg4: memref<128x128xbf16, #tpu.memory_space<vmem>>, %arg5: memref<1x128xf32, #tpu.memory_space<vmem>>, %arg6: memref<8x128xf32, #tpu.memory_space<vmem>>) attributes {dimension_semantics = [#tpu.dimension_semantics<parallel>, #tpu.dimension_semantics<parallel>, #tpu.dimension_semantics<arbitrary>], iteration_bounds = array<i64: 1, 1, 1>, scalar_prefetch = 0 : i64, scratch_operands = 0 : i64, tpu.core_type = #tpu.core_type<tc>, window_params = [{transform_indices = @transform_0, window_bounds = array<i64: 8, 128>}, {transform_indices = @transform_1, window_bounds = array<i64: 128, 128>}, {transform_indices = @transform_2, window_bounds = array<i64: 1, 128>}, {transform_indices = @transform_3, window_bounds = array<i64: 8, 128>}]} {
    %c0_i32 = arith.constant 0 : i32
    %0 = arith.cmpi eq, %arg2, %c0_i32 : i32
    %1 = arith.extui %0 : i1 to i32
    %c0_i32_0 = arith.constant 0 : i32
    %2 = arith.cmpi ne, %1, %c0_i32_0 : i32
    scf.if %2 {
      %c0_8 = arith.constant 0 : index
      %c0_9 = arith.constant 0 : index
      %10 = vector.load %arg5[%c0_8, %c0_9] : memref<1x128xf32, #tpu.memory_space<vmem>>, vector<1x128xf32>
      %11 = vector.shape_cast %10 : vector<1x128xf32> to vector<1x128xf32>
      %12 = vector.broadcast %11 : vector<1x128xf32> to vector<8x128xf32>
      %c0_10 = arith.constant 0 : index
      %c0_11 = arith.constant 0 : index
      %13 = vector.load %arg6[%c0_10, %c0_11] : memref<8x128xf32, #tpu.memory_space<vmem>>, vector<8x128xf32>
      tpu.vector_store %arg6[%c0_10, %c0_11], %12 {strides = array<i32>} : memref<8x128xf32, #tpu.memory_space<vmem>>, vector<8x128xf32>,
    } else {
    }
    %c0 = arith.constant 0 : index
    %c0_1 = arith.constant 0 : index
    %3 = vector.load %arg6[%c0, %c0_1] : memref<8x128xf32, #tpu.memory_space<vmem>>, vector<8x128xf32>
    %c0_2 = arith.constant 0 : index
    %c0_3 = arith.constant 0 : index
    %4 = vector.load %arg3[%c0_2, %c0_3] : memref<8x128xf32, #tpu.memory_space<vmem>>, vector<8x128xf32>
    %5 = arith.truncf %4 : vector<8x128xf32> to vector<8x128xbf16>
    %c0_4 = arith.constant 0 : index
    %c0_5 = arith.constant 0 : index
    %6 = vector.load %arg4[%c0_4, %c0_5] : memref<128x128xbf16, #tpu.memory_space<vmem>>, vector<128x128xbf16>
    %cst = arith.constant dense<0.000000e+00> : vector<8x128xf32>
    %7 = tpu.matmul %5, %6, %cst {dimension_numbers = #tpu.dot_dimension_numbers<[1], [0], [0], [1], [0, 0, 1, 1], [], []>} : vector<8x128xbf16>, vector<128x128xbf16>, vector<8x128xf32> -> vector<8x128xf32>
    %8 = arith.addf %3, %7 : vector<8x128xf32>
    %c0_6 = arith.constant 0 : index
    %c0_7 = arith.constant 0 : index
    %9 = vector.load %arg6[%c0_6, %c0_7] : memref<8x128xf32, #tpu.memory_space<vmem>>, vector<8x128xf32>
    tpu.vector_store %arg6[%c0_6, %c0_7], %8 {strides = array<i32>} : memref<8x128xf32, #tpu.memory_space<vmem>>, vector<8x128xf32>,
    return
  }
  func.func @transform_0(%arg0: i32, %arg1: i32, %arg2: i32) -> (i32, i32) {
    %c0_i32 = arith.constant 0 : i32
    return %arg0, %arg2 : i32, i32
  }
  func.func @transform_1(%arg0: i32, %arg1: i32, %arg2: i32) -> (i32, i32) {
    %c0_i32 = arith.constant 0 : i32
    return %arg2, %arg1 : i32, i32
  }
  func.func @transform_2(%arg0: i32, %arg1: i32, %arg2: i32) -> (i32, i32) {
    %c0_i32 = arith.constant 0 : i32
    %c0_i32_0 = arith.constant 0 : i32
    return %c0_i32, %arg1 : i32, i32
  }
  func.func @transform_3(%arg0: i32, %arg1: i32, %arg2: i32) -> (i32, i32) {
    %c0_i32 = arith.constant 0 : i32
    return %arg0, %arg1 : i32, i32
  }
}

</mosaic_0001>

<llo_original>
// kernel: modality_encoder_forward.1
$region0: #{modality_encoder_forward.1}
  #allocation0 [shape = 'u32[]', space=smem, size = 0x4, offset = 0x4, fixed_abs, tag = 'smem constant byte address 0x4 - core index']
  #allocation1 [shape = 'u32[144,128]{1,0:T(1,128)}', space=vmem, size = 0x12000, scoped, tag = 'internal scratch']
  %s0 = inlined_call_operand.vmem [shape: f32[8,128], index: 0, kind: input, shape index: {}]
  %s1 = inlined_call_operand.hbm [shape: bf16[128,128], index: 1, kind: input, shape index: {}]
  %s2 = inlined_call_operand.vmem [shape: f32[1,128], index: 2, kind: input, shape index: {}]
  %s3 = inlined_call_operand.hbm [shape: f32[8,128], index: 3, kind: output, shape index: {}]
  %s4 = sld [smem:[#allocation0]]
  $region30: #{modality_encoder_forward.1} parent=0
    _
  %s6 = ssub.s32 1, %s4
  %s7 = scalar_select 0, %s6, %s4
  $region1: #{modality_encoder_forward.1} parent=0
    #allocation2 [shape = 'u8[32768]{0}', space=vmem, size = 0x8000, scoped, tag = 'input window, operand 1, single buffered']
    #allocation3 [shape = 's32[1]{0}', space=sflag, size = 0x4, scoped, tag = 'scoped memory for modality_encoder_forward.1']
    #allocation4 [shape = 's32[1]{0}', space=sflag, size = 0x4, scoped, tag = 'scoped memory for modality_encoder_forward.1']
    #allocation5 [shape = 'u8[4096]{0}', space=vmem, size = 0x1000, scoped, tag = 'output window, operand 0, single buffered']
    %8 = vsyncpa [#allocation3], 0
    %9 = vsyncpa [#allocation4], 0
    // Predicated region
    $region2: #{modality_encoder_forward.1} parent=1 // pred_check
      _
    $region3: #{modality_encoder_forward.1} parent=1 // pred_check_branch
      %11 = sbr.rel (0) target = $region5
    $region4: #{modality_encoder_forward.1} parent=1 // pred_region
      _
    $region5: #{modality_encoder_forward.1} parent=1 // pred_fallthru
      _
    // Predicated region
    $region6: #{modality_encoder_forward.1} parent=1 // pred_check
      _
    $region7: #{modality_encoder_forward.1} parent=1 // pred_check_branch
      %13 = sbr.rel (0) target = $region9
    $region8: #{modality_encoder_forward.1} parent=1 // pred_region
      %s15 = ssub.s32 1024, 1024
      %16 = vsyncadd [#allocation3], %s15
      %s17 = sshll.u32 [#allocation2], 4
      %s18 = int_to_ptr.vmem [resolvable:$true] %s17
      %23 = dma.hbm_to_vmem [thread:$0]  %s1, 1024, %s18, [#allocation3], 64, 64, 4
    $region9: #{modality_encoder_forward.1} parent=1 // pred_fallthru
      _
    // Predicated region
    $region10: #{modality_encoder_forward.1} parent=1 // pred_check
      _
    $region11: #{modality_encoder_forward.1} parent=1 // pred_check_branch
      %25 = sbr.rel (0) target = $region13
    $region12: #{modality_encoder_forward.1} parent=1 // pred_region
      _
    $region13: #{modality_encoder_forward.1} parent=1 // pred_fallthru
      _
    // Predicated region
    $region14: #{modality_encoder_forward.1} parent=1 // pred_check
      _
    $region15: #{modality_encoder_forward.1} parent=1 // pred_check_branch
      %27 = sbr.rel (0) target = $region17
    $region16: #{modality_encoder_forward.1} parent=1 // pred_region
      %28 = dma.done [#allocation3], 1024
    $region17: #{modality_encoder_forward.1} parent=1 // pred_fallthru
      _
    %p30 = scmp.eq.s32.totalorder 0, 0
    // Predicated region
    $region18: #{modality_encoder_forward.1} parent=1 // pred_check
      %p31 = pneg %p30
    $region19: #{modality_encoder_forward.1} parent=1 // pred_check_branch
      %33 = sbr.rel (%p31) target = $region21
    $region20: #{modality_encoder_forward.1} parent=1 // pred_region
      %v34 = vld [vmem:[%s2] sm:$0x1]
      %v36 = vlaneseq
      %v37 = vshrl.u32 %v36, 7
      %v38 = vsub.s32 0, %v37
      %v39 = vrot.slane %v34, %v38
      %41 = vst [vmem:[#allocation5] sm:$0xff] %v39
    $region21: #{modality_encoder_forward.1} parent=1 // pred_fallthru
      _
    %v42 = vld [vmem:[#allocation5] sm:$0xff]
    %v43 = vld [vmem:[%s0] sm:$0xff]
    %v44 = vpack.c.bf16 %v43, %v43
    %v45 = vld [vmem:[#allocation2] sm:$0xf]
    %v46 = vld [vmem:[#allocation2 + $0x4] sm:$0xf]
    %v47 = vld [vmem:[#allocation2 + $0x8] sm:$0xf]
    %v48 = vld [vmem:[#allocation2 + $0xc] sm:$0xf]
    %v49 = vld [vmem:[#allocation2 + $0x10] sm:$0xf]
    %v50 = vld [vmem:[#allocation2 + $0x14] sm:$0xf]
    %v51 = vld [vmem:[#allocation2 + $0x18] sm:$0xf]
    %v52 = vld [vmem:[#allocation2 + $0x1c] sm:$0xf]
    %v53 = vld [vmem:[#allocation2 + $0x20] sm:$0xf]
    %v54 = vld [vmem:[#allocation2 + $0x24] sm:$0xf]
    %v55 = vld [vmem:[#allocation2 + $0x28] sm:$0xf]
    %v56 = vld [vmem:[#allocation2 + $0x2c] sm:$0xf]
    %v57 = vld [vmem:[#allocation2 + $0x30] sm:$0xf]
    %v58 = vld [vmem:[#allocation2 + $0x34] sm:$0xf]
    %v59 = vld [vmem:[#allocation2 + $0x38] sm:$0xf]
    %v60 = vld [vmem:[#allocation2 + $0x3c] sm:$0xf]
    %v77 = vunpack.c.l.b16 %v45
    %v78 = vunpack.c.l.b16 %v46
    %v79 = vunpack.c.l.b16 %v47
    %v80 = vunpack.c.l.b16 %v48
    %v81 = vunpack.c.l.b16 %v49
    %v82 = vunpack.c.l.b16 %v50
    %v83 = vunpack.c.l.b16 %v51
    %v84 = vunpack.c.l.b16 %v52
    %v85 = vunpack.c.l.b16 %v53
    %v86 = vunpack.c.l.b16 %v54
    %v87 = vunpack.c.l.b16 %v55
    %v88 = vunpack.c.l.b16 %v56
    %v89 = vunpack.c.l.b16 %v57
    %v90 = vunpack.c.l.b16 %v58
    %v91 = vunpack.c.l.b16 %v59
    %v92 = vunpack.c.l.b16 %v60
    %v93 = vpack.c.b16 %v78, %v77
    %v94 = vpack.c.b16 %v80, %v79
    %v95 = vpack.c.b16 %v82, %v81
    %v96 = vpack.c.b16 %v84, %v83
    %v97 = vpack.c.b16 %v86, %v85
    %v98 = vpack.c.b16 %v88, %v87
    %v99 = vpack.c.b16 %v90, %v89
    %v100 = vpack.c.b16 %v92, %v91
    %109 = vmatprep.subr.bf16.mxu0 0
    %110 = vmatpush1.bf16.msra.mxu0 %v100
    %111 = vmatprep.subr.bf16.mxu0 0
    %112 = vmatpush1.bf16.msra.mxu0 %v99
    %113 = vmatprep.subr.bf16.mxu0 0
    %114 = vmatpush1.bf16.msra.mxu0 %v98
    %115 = vmatprep.subr.bf16.mxu0 0
    %116 = vmatpush1.bf16.msra.mxu0 %v97
    %117 = vmatprep.subr.bf16.mxu0 0
    %118 = vmatpush1.bf16.msra.mxu0 %v96
    %119 = vmatprep.subr.bf16.mxu0 0
    %120 = vmatpush1.bf16.msra.mxu0 %v95
    %121 = vmatprep.subr.bf16.mxu0 0
    %122 = vmatpush1.bf16.msra.mxu0 %v94
    %123 = vmatprep.subr.bf16.mxu0 0
    %124 = vmatpush1.bf16.msra.mxu0 %v93
    %125 = vmatprep.subr.bf16.mxu0 0
    %126 = vmatpush2.bf16.msra.mxu0 0
    %127 = vmatprep.subr.bf16.mxu0 0
    %128 = vmatpush2.bf16.msra.mxu0 0
    %129 = vmatprep.subr.bf16.mxu0 0
    %130 = vmatpush2.bf16.msra.mxu0 0
    %131 = vmatprep.subr.bf16.mxu0 0
    %132 = vmatpush2.bf16.msra.mxu0 0
    %133 = vmatprep.subr.bf16.mxu0 0
    %134 = vmatpush2.bf16.msra.mxu0 0
    %135 = vmatprep.subr.bf16.mxu0 0
    %136 = vmatpush2.bf16.msra.mxu0 0
    %137 = vmatprep.subr.bf16.mxu0 0
    %138 = vmatpush2.bf16.msra.mxu0 0
    %139 = vmatprep.subr.bf16.mxu0 0
    %140 = vmatpush2.bf16.msra.mxu0 0
    %141 = vmatprep.mubr.bf16.mxu0 0
    %142 = vmatmul.mubr.bf16.gmra.mxu0 %v44
    %v143 = vpop.f32.mrf.mxu0
    %v144 = vadd.f32 0.0, %v143
    %v145 = vpop.f32.mrf.mxu0
    %v146 = vpop.f32.mrf.mxu0
    %v147 = vpop.f32.mrf.mxu0
    %148 = vdwg.mxu0
    %v149 = vadd.f32 %v42, %v144
    %150 = vst [vmem:[#allocation5] sm:$0xff] %v149
    // Predicated region
    $region22: #{modality_encoder_forward.1} parent=1 // pred_check
      _
    $region23: #{modality_encoder_forward.1} parent=1 // pred_check_branch
      %152 = sbr.rel (0) target = $region25
    $region24: #{modality_encoder_forward.1} parent=1 // pred_region
      %s154 = ssub.s32 128, 128
      %155 = vsyncadd [#allocation4], %s154
      %s157 = sshll.u32 [#allocation5], 4
      %s158 = int_to_ptr.vmem [resolvable:$true] %s157
      %160 = dma.vmem_to_hbm [thread:$0]  %s158, 128, %s3, [#allocation4]
    $region25: #{modality_encoder_forward.1} parent=1 // pred_fallthru
      _
    // Predicated region
    $region26: #{modality_encoder_forward.1} parent=1 // pred_check
      _
    $region27: #{modality_encoder_forward.1} parent=1 // pred_check_branch
      %162 = sbr.rel (0) target = $region29
    $region28: #{modality_encoder_forward.1} parent=1 // pred_region
      %163 = dma.done [#allocation4], 128
    $region29: #{modality_encoder_forward.1} parent=1 // pred_fallthru
      _
    %164 = vsyncpa [#allocation3], 1
    %165 = vsyncpa [#allocation4], 1

</llo_original>
